<compile_context>
chip_gen: v6e
topology: v6e:2x2x1
jax: 0.10.0
libtpu: 0.0.40
codegen_flags: <defaults>
</compile_context>

<pallas_src>
import functools

import jax
import jax.numpy as jnp
from jax import lax
from jax.experimental import pallas as pl
from jax.experimental.pallas import tpu as pltpu

KERNEL_SIZES = (9, 19, 39)
K_MAX = max(KERNEL_SIZES)      # 39
MAX_PAD = K_MAX // 2           # 19
EPS = 1e-5


# ----------------------------------------------------------------------------
# Fused kernel: folded convs (one deep matmul) + MaxUnpool + BatchNorm + ReLU
# ----------------------------------------------------------------------------
def _fused_kernel(xp_ref, idx_ref, w_ref, gamma_ref, beta_ref, o_ref, slab_ref,
                  *, c_in, c_out, batch, length):
    n = batch * length                       # lane-dense width (B*L)

    # --- im2col slab assembly: 39 static windows -> VMEM scratch ------------
    # slab[j*c_in + c, l*B + b] = x_pad[b, c, j + l]
    xp = xp_ref[...]                         # (c_in, (L + 2*MAX_PAD) * B)
    for j in range(K_MAX):                   # static taps
        slab_ref[j * c_in:(j + 1) * c_in, :] = xp[:, j * batch:j * batch + n]

    # --- one deep MXU matmul for all linear paths ----------------------------
    #   rows [0, c_out)        : bottleneck(concat(Z1, Z2, Z3))   (folded)
    #   rows [c_out, 2*c_out)  : conv_to_maxpool(X)               (virtual tap)
    zz = jnp.dot(w_ref[...], slab_ref[...], preferred_element_type=jnp.float32)
    bn_in = zz[:c_out, :]                    # (c_out, n)
    z4 = zz[c_out:, :]                       # (c_out, n)

    # --- MaxUnpool1d(kernel=3, stride=1, padding=1) as one-hot scatter-sum ---
    # TODO(synk): duplicate-index tie-breaking of nn.MaxUnpool1d is not
    # reproduced (exact whenever indices are unique per (b, c) row); at
    # production L the (c_out, n, n) one-hot should be tiled over n.
    idx = idx_ref[...]                                           # (c_out, n)
    lane = lax.broadcasted_iota(jnp.int32, (c_out, n, n), 2)
    onehot = (idx[:, :, None] == lane).astype(jnp.float32)       # (c_out, n, n)
    mup = jnp.sum(z4[:, :, None] * onehot, axis=1)               # (c_out, n)

    s = bn_in + mup

    # --- BatchNorm1d (training-mode biased batch stats) + ReLU ---------------
    # TODO(synk): running_mean / running_var (eval-mode semantics) not updated.
    inv_n = 1.0 / float(n)
    mean = jnp.sum(s, axis=1, keepdims=True) * inv_n             # (c_out, 1)
    var = jnp.sum(s * s, axis=1, keepdims=True) * inv_n - mean * mean
    scale = gamma_ref[...] * lax.rsqrt(var + EPS)
    bias = beta_ref[...] - mean * scale
    o_ref[...] = jnp.maximum(s * scale + bias, 0.0)


# ----------------------------------------------------------------------------
# Trace-time weight folding (runs once in XLA)
# ----------------------------------------------------------------------------
def _fold_weights(params, c_in, c_out, bottleneck):
    """Fold bottleneck 1x1 into the ConvTranspose branches, merge them into one
    width-39 'same' conv, append conv_to_maxpool as a virtual centre tap.

    Returns the im2col weight of shape (2*c_out, K_MAX*c_in) whose column
    ordering (j*c_in + c) matches the in-kernel slab rows."""
    wb = params["wb"]                                            # (c_out, 3*bneck)
    v = jnp.zeros((K_MAX, c_out, c_in), jnp.float32)
    for i, (name, k) in enumerate(zip(("w1", "w2", "w3"), KERNEL_SIZES)):
        w_t = params[name]                                       # (c_in, bneck, k) PyTorch layout
        # ConvTranspose1d(stride=1, pad=k//2, bias=False) == 'same' conv with
        # flipped, transposed kernel: w_eff[j, o, c] = w_t[c, o, k-1-j]
        w_eff = jnp.flip(w_t, axis=2).transpose(2, 1, 0)         # (k, bneck, c_in)
        wb_i = wb[:, i * bottleneck:(i + 1) * bottleneck]        # (c_out, bneck)
        v_i = jnp.einsum("ob,kbc->koc", wb_i, w_eff)             # (k, c_out, c_in)
        off = MAX_PAD - k // 2                                   # centre in width-39 window
        v = v.at[off:off + k].add(v_i)
    w4_tap = jnp.zeros((K_MAX, c_out, c_in), jnp.float32).at[MAX_PAD].set(params["w4"])
    w_all = jnp.concatenate([v, w4_tap], axis=1)                 # (K, 2*c_out, c_in)
    return jnp.transpose(w_all, (1, 0, 2)).reshape(2 * c_out, K_MAX * c_in)


@jax.jit
def inception_transpose_forward(x, indices, params):
    B, c_in, L = x.shape
    c_out = params["w4"].shape[0]
    bottleneck = params["w1"].shape[1]
    n = B * L
    lp = L + 2 * MAX_PAD

    w_mat = _fold_weights(params, c_in, c_out, bottleneck)

    # Batch-interleaved lane layout: column index = position * B + batch.
    xp = jnp.pad(x, ((0, 0), (0, 0), (MAX_PAD, MAX_PAD)))        # (B, c_in, lp)
    xp_int = jnp.transpose(xp, (1, 2, 0)).reshape(c_in, lp * B)  # (c_in, lp*B)
    idx_int = (jnp.transpose(indices, (1, 2, 0)) * B
               + jnp.arange(B, dtype=indices.dtype)[None, None, :]
               ).reshape(c_out, n)                               # (c_out, n)

    out_int = pl.pallas_call(
        functools.partial(_fused_kernel, c_in=c_in, c_out=c_out,
                          batch=B, length=L),
        out_shape=jax.ShapeDtypeStruct((c_out, n), jnp.float32),
        grid=(1,),                                               # whole batch per step
        in_specs=[
            pl.BlockSpec((c_in, lp * B), lambda i: (0, 0)),      # padded input (interleaved)
            pl.BlockSpec((c_out, n), lambda i: (0, 0)),          # unpool target columns
            pl.BlockSpec((2 * c_out, K_MAX * c_in), lambda i: (0, 0)),   # folded weights
            pl.BlockSpec((c_out, 1), lambda i: (0, 0)),          # gamma
            pl.BlockSpec((c_out, 1), lambda i: (0, 0)),          # beta
        ],
        out_specs=pl.BlockSpec((c_out, n), lambda i: (0, 0)),
        scratch_shapes=[pltpu.VMEM((K_MAX * c_in, n), jnp.float32)],  # im2col slab
        compiler_params=pltpu.CompilerParams(
            dimension_semantics=("arbitrary",)),
    )(xp_int, idx_int, w_mat, params["gamma"], params["beta"])

    # Undo the batch interleave: out[b, c, l] = out_int[c, l*B + b]
    return jnp.transpose(out_int.reshape(c_out, L, B), (2, 0, 1))


# ----------------------------------------------------------------------------
# Parameters (PyTorch-native layouts, bias=False as in the reference module)
# ----------------------------------------------------------------------------
def make_params(key, c_in, c_out, bottleneck):
    ks = jax.random.split(key, 5)
    params = {}
    for name, k_sz, kk in zip(("w1", "w2", "w3"), KERNEL_SIZES, ks[:3]):
        # ConvTranspose1d weight layout: (C_in, bottleneck, k)
        params[name] = 0.1 * jax.random.normal(kk, (c_in, bottleneck, k_sz), jnp.float32)
    # conv_to_maxpool: Conv1d (C_out, C_in, 1) -> (C_out, C_in)
    params["w4"] = 0.1 * jax.random.normal(ks[3], (c_out, c_in), jnp.float32)
    # bottleneck: Conv1d (C_out, 3*bottleneck, 1) -> (C_out, 3*bottleneck)
    params["wb"] = 0.1 * jax.random.normal(ks[4], (c_out, 3 * bottleneck), jnp.float32)
    # BatchNorm1d default affine init
    params["gamma"] = jnp.ones((c_out, 1), jnp.float32)
    params["beta"] = jnp.zeros((c_out, 1), jnp.float32)
    return params


# ----------------------------------------------------------------------------
# Pure-JAX reference (unfolded, straightforward) for correctness checking
# ----------------------------------------------------------------------------
def reference_forward(x, indices, params):
    hi = jax.lax.Precision.HIGHEST
    B, c_in, L = x.shape
    c_out = params["w4"].shape[0]
    zs = []
    for name, k in zip(("w1", "w2", "w3"), KERNEL_SIZES):
        w = params[name]                                         # (c_in, bneck, k)
        pad = k // 2
        xpad = jnp.pad(x, ((0, 0), (0, 0), (pad, pad)))
        y = jnp.zeros((B, w.shape[1], L), jnp.float32)
        for j in range(k):                                       # ConvTranspose1d, stride 1
            y = y + jnp.einsum("co,bcl->bol", w[:, :, k - 1 - j],
                               xpad[:, :, j:j + L], precision=hi)
        zs.append(y)
    z = jnp.concatenate(zs, axis=1)                              # (B, 3*bneck, L)
    bn_in = jnp.einsum("od,bdl->bol", params["wb"], z, precision=hi)
    z4 = jnp.einsum("oc,bcl->bol", params["w4"], x, precision=hi)
    onehot = (indices[:, :, :, None] == jnp.arange(L)[None, None, None, :]
              ).astype(jnp.float32)                              # (B, c_out, L, L)
    mup = jnp.einsum("bct,bctl->bcl", z4, onehot, precision=hi)
    s = bn_in + mup
    mean = jnp.mean(s, axis=(0, 2), keepdims=True)
    var = jnp.mean((s - mean) ** 2, axis=(0, 2), keepdims=True)  # biased, training mode
    yhat = (s - mean) / jnp.sqrt(var + EPS)
    yhat = yhat * params["gamma"].reshape(1, c_out, 1) + params["beta"].reshape(1, c_out, 1)
    return jnp.maximum(yhat, 0.0)


if __name__ == "__main__":
    B, C_IN, C_OUT, BOTTLENECK, L = 2, 4, 8, 32, 16

    root = jax.random.PRNGKey(0)
    k_x, k_idx, k_w = jax.random.split(root, 3)

    x = jax.random.normal(k_x, (B, C_IN, L), jnp.float32)

    # Synthetic MaxUnpool indices: a permutation of [0, L) per (b, c) row, so
    # the in-kernel one-hot scatter-sum matches PyTorch's scatter exactly.
    row_keys = jax.random.split(k_idx, B * C_OUT)
    indices = jax.vmap(lambda k: jax.random.permutation(k, L))(row_keys)
    indices = indices.reshape(B, C_OUT, L).astype(jnp.int32)

    params = make_params(k_w, C_IN, C_OUT, BOTTLENECK)

    out = inception_transpose_forward(x, indices, params)
    out = jax.block_until_ready(out)
    assert out.shape == (B, C_OUT, L) and bool(jnp.all(out >= 0.0))

    ref = reference_forward(x, indices, params)
    assert bool(jnp.allclose(out, ref, rtol=2e-2, atol=2e-2)), "mismatch vs reference"

    print("KERNEL_OK")
</pallas_src>

<mosaic_0001>
module attributes {stable_mosaic.version = 11 : i64} {
  func.func @_fused_kernel(%arg0: i32, %arg1: memref<4x108xf32, #tpu.memory_space<vmem>>, %arg2: memref<8x32xi32, #tpu.memory_space<vmem>>, %arg3: memref<16x156xf32, #tpu.memory_space<vmem>>, %arg4: memref<8x1xf32, #tpu.memory_space<vmem>>, %arg5: memref<8x1xf32, #tpu.memory_space<vmem>>, %arg6: memref<8x32xf32, #tpu.memory_space<vmem>>, %arg7: memref<156x32xf32, #tpu.memory_space<vmem>>) attributes {dimension_semantics = [#tpu.dimension_semantics<arbitrary>], iteration_bounds = array<i64: 1>, scalar_prefetch = 0 : i64, scratch_operands = 1 : i64, tpu.core_type = #tpu.core_type<tc>, window_params = [{pipeline_mode = #tpu.pipeline_mode<synchronous>, transform_indices = @transform_0, window_bounds = array<i64: 4, 108>}, {pipeline_mode = #tpu.pipeline_mode<synchronous>, transform_indices = @transform_1, window_bounds = array<i64: 8, 32>}, {pipeline_mode = #tpu.pipeline_mode<synchronous>, transform_indices = @transform_2, window_bounds = array<i64: 16, 156>}, {pipeline_mode = #tpu.pipeline_mode<synchronous>, transform_indices = @transform_3, window_bounds = array<i64: 8, 1>}, {pipeline_mode = #tpu.pipeline_mode<synchronous>, transform_indices = @transform_4, window_bounds = array<i64: 8, 1>}, {pipeline_mode = #tpu.pipeline_mode<synchronous>, transform_indices = @transform_5, window_bounds = array<i64: 8, 32>}]} {
    %c0 = arith.constant 0 : index
    %c0_0 = arith.constant 0 : index
    %0 = vector.load %arg1[%c0, %c0_0] : memref<4x108xf32, #tpu.memory_space<vmem>>, vector<4x108xf32>
    %1 = vector.extract_strided_slice %0 {offsets = [0, 0], sizes = [4, 32], strides = [1, 1]} : vector<4x108xf32> to vector<4x32xf32>
    %c0_1 = arith.constant 0 : index
    %c0_2 = arith.constant 0 : index
    %2 = vector.load %arg7[%c0_1, %c0_2] : memref<156x32xf32, #tpu.memory_space<vmem>>, vector<4x32xf32>
    tpu.vector_store %arg7[%c0_1, %c0_2], %1 {strides = array<i32>} : memref<156x32xf32, #tpu.memory_space<vmem>>, vector<4x32xf32>,
    %3 = vector.extract_strided_slice %0 {offsets = [0, 2], sizes = [4, 32], strides = [1, 1]} : vector<4x108xf32> to vector<4x32xf32>
    %c4 = arith.constant 4 : index
    %c0_3 = arith.constant 0 : index
    %4 = vector.load %arg7[%c4, %c0_3] : memref<156x32xf32, #tpu.memory_space<vmem>>, vector<4x32xf32>
    tpu.vector_store %arg7[%c4, %c0_3], %3 {strides = array<i32>} : memref<156x32xf32, #tpu.memory_space<vmem>>, vector<4x32xf32>,
    %5 = vector.extract_strided_slice %0 {offsets = [0, 4], sizes = [4, 32], strides = [1, 1]} : vector<4x108xf32> to vector<4x32xf32>
    %c8 = arith.constant 8 : index
    %c0_4 = arith.constant 0 : index
    %6 = vector.load %arg7[%c8, %c0_4] : memref<156x32xf32, #tpu.memory_space<vmem>>, vector<4x32xf32>
    tpu.vector_store %arg7[%c8, %c0_4], %5 {strides = array<i32>} : memref<156x32xf32, #tpu.memory_space<vmem>>, vector<4x32xf32>,
    %7 = vector.extract_strided_slice %0 {offsets = [0, 6], sizes = [4, 32], strides = [1, 1]} : vector<4x108xf32> to vector<4x32xf32>
    %c12 = arith.constant 12 : index
    %c0_5 = arith.constant 0 : index
    %8 = vector.load %arg7[%c12, %c0_5] : memref<156x32xf32, #tpu.memory_space<vmem>>, vector<4x32xf32>
    tpu.vector_store %arg7[%c12, %c0_5], %7 {strides = array<i32>} : memref<156x32xf32, #tpu.memory_space<vmem>>, vector<4x32xf32>,
    %9 = vector.extract_strided_slice %0 {offsets = [0, 8], sizes = [4, 32], strides = [1, 1]} : vector<4x108xf32> to vector<4x32xf32>
    %c16 = arith.constant 16 : index
    %c0_6 = arith.constant 0 : index
    %10 = vector.load %arg7[%c16, %c0_6] : memref<156x32xf32, #tpu.memory_space<vmem>>, vector<4x32xf32>
    tpu.vector_store %arg7[%c16, %c0_6], %9 {strides = array<i32>} : memref<156x32xf32, #tpu.memory_space<vmem>>, vector<4x32xf32>,
    %11 = vector.extract_strided_slice %0 {offsets = [0, 10], sizes = [4, 32], strides = [1, 1]} : vector<4x108xf32> to vector<4x32xf32>
    %c20 = arith.constant 20 : index
    %c0_7 = arith.constant 0 : index
    %12 = vector.load %arg7[%c20, %c0_7] : memref<156x32xf32, #tpu.memory_space<vmem>>, vector<4x32xf32>
    tpu.vector_store %arg7[%c20, %c0_7], %11 {strides = array<i32>} : memref<156x32xf32, #tpu.memory_space<vmem>>, vector<4x32xf32>,
    %13 = vector.extract_strided_slice %0 {offsets = [0, 12], sizes = [4, 32], strides = [1, 1]} : vector<4x108xf32> to vector<4x32xf32>
    %c24 = arith.constant 24 : index
    %c0_8 = arith.constant 0 : index
    %14 = vector.load %arg7[%c24, %c0_8] : memref<156x32xf32, #tpu.memory_space<vmem>>, vector<4x32xf32>
    tpu.vector_store %arg7[%c24, %c0_8], %13 {strides = array<i32>} : memref<156x32xf32, #tpu.memory_space<vmem>>, vector<4x32xf32>,
    %15 = vector.extract_strided_slice %0 {offsets = [0, 14], sizes = [4, 32], strides = [1, 1]} : vector<4x108xf32> to vector<4x32xf32>
    %c28 = arith.constant 28 : index
    %c0_9 = arith.constant 0 : index
    %16 = vector.load %arg7[%c28, %c0_9] : memref<156x32xf32, #tpu.memory_space<vmem>>, vector<4x32xf32>
    tpu.vector_store %arg7[%c28, %c0_9], %15 {strides = array<i32>} : memref<156x32xf32, #tpu.memory_space<vmem>>, vector<4x32xf32>,
    %17 = vector.extract_strided_slice %0 {offsets = [0, 16], sizes = [4, 32], strides = [1, 1]} : vector<4x108xf32> to vector<4x32xf32>
    %c32 = arith.constant 32 : index
    %c0_10 = arith.constant 0 : index
    %18 = vector.load %arg7[%c32, %c0_10] : memref<156x32xf32, #tpu.memory_space<vmem>>, vector<4x32xf32>
    tpu.vector_store %arg7[%c32, %c0_10], %17 {strides = array<i32>} : memref<156x32xf32, #tpu.memory_space<vmem>>, vector<4x32xf32>,
    %19 = vector.extract_strided_slice %0 {offsets = [0, 18], sizes = [4, 32], strides = [1, 1]} : vector<4x108xf32> to vector<4x32xf32>
    %c36 = arith.constant 36 : index
    %c0_11 = arith.constant 0 : index
    %20 = vector.load %arg7[%c36, %c0_11] : memref<156x32xf32, #tpu.memory_space<vmem>>, vector<4x32xf32>
    tpu.vector_store %arg7[%c36, %c0_11], %19 {strides = array<i32>} : memref<156x32xf32, #tpu.memory_space<vmem>>, vector<4x32xf32>,
    %21 = vector.extract_strided_slice %0 {offsets = [0, 20], sizes = [4, 32], strides = [1, 1]} : vector<4x108xf32> to vector<4x32xf32>
    %c40 = arith.constant 40 : index
    %c0_12 = arith.constant 0 : index
    %22 = vector.load %arg7[%c40, %c0_12] : memref<156x32xf32, #tpu.memory_space<vmem>>, vector<4x32xf32>
    tpu.vector_store %arg7[%c40, %c0_12], %21 {strides = array<i32>} : memref<156x32xf32, #tpu.memory_space<vmem>>, vector<4x32xf32>,
    %23 = vector.extract_strided_slice %0 {offsets = [0, 22], sizes = [4, 32], strides = [1, 1]} : vector<4x108xf32> to vector<4x32xf32>
    %c44 = arith.constant 44 : index
    %c0_13 = arith.constant 0 : index
    %24 = vector.load %arg7[%c44, %c0_13] : memref<156x32xf32, #tpu.memory_space<vmem>>, vector<4x32xf32>
    tpu.vector_store %arg7[%c44, %c0_13], %23 {strides = array<i32>} : memref<156x32xf32, #tpu.memory_space<vmem>>, vector<4x32xf32>,
    %25 = vector.extract_strided_slice %0 {offsets = [0, 24], sizes = [4, 32], strides = [1, 1]} : vector<4x108xf32> to vector<4x32xf32>
    %c48 = arith.constant 48 : index
    %c0_14 = arith.constant 0 : index
    %26 = vector.load %arg7[%c48, %c0_14] : memref<156x32xf32, #tpu.memory_space<vmem>>, vector<4x32xf32>
    tpu.vector_store %arg7[%c48, %c0_14], %25 {strides = array<i32>} : memref<156x32xf32, #tpu.memory_space<vmem>>, vector<4x32xf32>,
    %27 = vector.extract_strided_slice %0 {offsets = [0, 26], sizes = [4, 32], strides = [1, 1]} : vector<4x108xf32> to vector<4x32xf32>
    %c52 = arith.constant 52 : index
    %c0_15 = arith.constant 0 : index
    %28 = vector.load %arg7[%c52, %c0_15] : memref<156x32xf32, #tpu.memory_space<vmem>>, vector<4x32xf32>
    tpu.vector_store %arg7[%c52, %c0_15], %27 {strides = array<i32>} : memref<156x32xf32, #tpu.memory_space<vmem>>, vector<4x32xf32>,
    %29 = vector.extract_strided_slice %0 {offsets = [0, 28], sizes = [4, 32], strides = [1, 1]} : vector<4x108xf32> to vector<4x32xf32>
    %c56 = arith.constant 56 : index
    %c0_16 = arith.constant 0 : index
    %30 = vector.load %arg7[%c56, %c0_16] : memref<156x32xf32, #tpu.memory_space<vmem>>, vector<4x32xf32>
    tpu.vector_store %arg7[%c56, %c0_16], %29 {strides = array<i32>} : memref<156x32xf32, #tpu.memory_space<vmem>>, vector<4x32xf32>,
    %31 = vector.extract_strided_slice %0 {offsets = [0, 30], sizes = [4, 32], strides = [1, 1]} : vector<4x108xf32> to vector<4x32xf32>
    %c60 = arith.constant 60 : index
    %c0_17 = arith.constant 0 : index
    %32 = vector.load %arg7[%c60, %c0_17] : memref<156x32xf32, #tpu.memory_space<vmem>>, vector<4x32xf32>
    tpu.vector_store %arg7[%c60, %c0_17], %31 {strides = array<i32>} : memref<156x32xf32, #tpu.memory_space<vmem>>, vector<4x32xf32>,
    %33 = vector.extract_strided_slice %0 {offsets = [0, 32], sizes = [4, 32], strides = [1, 1]} : vector<4x108xf32> to vector<4x32xf32>
    %c64 = arith.constant 64 : index
    %c0_18 = arith.constant 0 : index
    %34 = vector.load %arg7[%c64, %c0_18] : memref<156x32xf32, #tpu.memory_space<vmem>>, vector<4x32xf32>
    tpu.vector_store %arg7[%c64, %c0_18], %33 {strides = array<i32>} : memref<156x32xf32, #tpu.memory_space<vmem>>, vector<4x32xf32>,
    %35 = vector.extract_strided_slice %0 {offsets = [0, 34], sizes = [4, 32], strides = [1, 1]} : vector<4x108xf32> to vector<4x32xf32>
    %c68 = arith.constant 68 : index
    %c0_19 = arith.constant 0 : index
    %36 = vector.load %arg7[%c68, %c0_19] : memref<156x32xf32, #tpu.memory_space<vmem>>, vector<4x32xf32>
    tpu.vector_store %arg7[%c68, %c0_19], %35 {strides = array<i32>} : memref<156x32xf32, #tpu.memory_space<vmem>>, vector<4x32xf32>,
    %37 = vector.extract_strided_slice %0 {offsets = [0, 36], sizes = [4, 32], strides = [1, 1]} : vector<4x108xf32> to vector<4x32xf32>
    %c72 = arith.constant 72 : index
    %c0_20 = arith.constant 0 : index
    %38 = vector.load %arg7[%c72, %c0_20] : memref<156x32xf32, #tpu.memory_space<vmem>>, vector<4x32xf32>
    tpu.vector_store %arg7[%c72, %c0_20], %37 {strides = array<i32>} : memref<156x32xf32, #tpu.memory_space<vmem>>, vector<4x32xf32>,
    %39 = vector.extract_strided_slice %0 {offsets = [0, 38], sizes = [4, 32], strides = [1, 1]} : vector<4x108xf32> to vector<4x32xf32>
    %c76 = arith.constant 76 : index
    %c0_21 = arith.constant 0 : index
    %40 = vector.load %arg7[%c76, %c0_21] : memref<156x32xf32, #tpu.memory_space<vmem>>, vector<4x32xf32>
    tpu.vector_store %arg7[%c76, %c0_21], %39 {strides = array<i32>} : memref<156x32xf32, #tpu.memory_space<vmem>>, vector<4x32xf32>,
    %41 = vector.extract_strided_slice %0 {offsets = [0, 40], sizes = [4, 32], strides = [1, 1]} : vector<4x108xf32> to vector<4x32xf32>
    %c80 = arith.constant 80 : index
    %c0_22 = arith.constant 0 : index
    %42 = vector.load %arg7[%c80, %c0_22] : memref<156x32xf32, #tpu.memory_space<vmem>>, vector<4x32xf32>
    tpu.vector_store %arg7[%c80, %c0_22], %41 {strides = array<i32>} : memref<156x32xf32, #tpu.memory_space<vmem>>, vector<4x32xf32>,
    %43 = vector.extract_strided_slice %0 {offsets = [0, 42], sizes = [4, 32], strides = [1, 1]} : vector<4x108xf32> to vector<4x32xf32>
    %c84 = arith.constant 84 : index
    %c0_23 = arith.constant 0 : index
    %44 = vector.load %arg7[%c84, %c0_23] : memref<156x32xf32, #tpu.memory_space<vmem>>, vector<4x32xf32>
    tpu.vector_store %arg7[%c84, %c0_23], %43 {strides = array<i32>} : memref<156x32xf32, #tpu.memory_space<vmem>>, vector<4x32xf32>,
    %45 = vector.extract_strided_slice %0 {offsets = [0, 44], sizes = [4, 32], strides = [1, 1]} : vector<4x108xf32> to vector<4x32xf32>
    %c88 = arith.constant 88 : index
    %c0_24 = arith.constant 0 : index
    %46 = vector.load %arg7[%c88, %c0_24] : memref<156x32xf32, #tpu.memory_space<vmem>>, vector<4x32xf32>
    tpu.vector_store %arg7[%c88, %c0_24], %45 {strides = array<i32>} : memref<156x32xf32, #tpu.memory_space<vmem>>, vector<4x32xf32>,
    %47 = vector.extract_strided_slice %0 {offsets = [0, 46], sizes = [4, 32], strides = [1, 1]} : vector<4x108xf32> to vector<4x32xf32>
    %c92 = arith.constant 92 : index
    %c0_25 = arith.constant 0 : index
    %48 = vector.load %arg7[%c92, %c0_25] : memref<156x32xf32, #tpu.memory_space<vmem>>, vector<4x32xf32>
    tpu.vector_store %arg7[%c92, %c0_25], %47 {strides = array<i32>} : memref<156x32xf32, #tpu.memory_space<vmem>>, vector<4x32xf32>,
    %49 = vector.extract_strided_slice %0 {offsets = [0, 48], sizes = [4, 32], strides = [1, 1]} : vector<4x108xf32> to vector<4x32xf32>
    %c96 = arith.constant 96 : index
    %c0_26 = arith.constant 0 : index
    %50 = vector.load %arg7[%c96, %c0_26] : memref<156x32xf32, #tpu.memory_space<vmem>>, vector<4x32xf32>
    tpu.vector_store %arg7[%c96, %c0_26], %49 {strides = array<i32>} : memref<156x32xf32, #tpu.memory_space<vmem>>, vector<4x32xf32>,
    %51 = vector.extract_strided_slice %0 {offsets = [0, 50], sizes = [4, 32], strides = [1, 1]} : vector<4x108xf32> to vector<4x32xf32>
    %c100 = arith.constant 100 : index
    %c0_27 = arith.constant 0 : index
    %52 = vector.load %arg7[%c100, %c0_27] : memref<156x32xf32, #tpu.memory_space<vmem>>, vector<4x32xf32>
    tpu.vector_store %arg7[%c100, %c0_27], %51 {strides = array<i32>} : memref<156x32xf32, #tpu.memory_space<vmem>>, vector<4x32xf32>,
    %53 = vector.extract_strided_slice %0 {offsets = [0, 52], sizes = [4, 32], strides = [1, 1]} : vector<4x108xf32> to vector<4x32xf32>
    %c104 = arith.constant 104 : index
    %c0_28 = arith.constant 0 : index
    %54 = vector.load %arg7[%c104, %c0_28] : memref<156x32xf32, #tpu.memory_space<vmem>>, vector<4x32xf32>
    tpu.vector_store %arg7[%c104, %c0_28], %53 {strides = array<i32>} : memref<156x32xf32, #tpu.memory_space<vmem>>, vector<4x32xf32>,
    %55 = vector.extract_strided_slice %0 {offsets = [0, 54], sizes = [4, 32], strides = [1, 1]} : vector<4x108xf32> to vector<4x32xf32>
    %c108 = arith.constant 108 : index
    %c0_29 = arith.constant 0 : index
    %56 = vector.load %arg7[%c108, %c0_29] : memref<156x32xf32, #tpu.memory_space<vmem>>, vector<4x32xf32>
    tpu.vector_store %arg7[%c108, %c0_29], %55 {strides = array<i32>} : memref<156x32xf32, #tpu.memory_space<vmem>>, vector<4x32xf32>,
    %57 = vector.extract_strided_slice %0 {offsets = [0, 56], sizes = [4, 32], strides = [1, 1]} : vector<4x108xf32> to vector<4x32xf32>
    %c112 = arith.constant 112 : index
    %c0_30 = arith.constant 0 : index
    %58 = vector.load %arg7[%c112, %c0_30] : memref<156x32xf32, #tpu.memory_space<vmem>>, vector<4x32xf32>
    tpu.vector_store %arg7[%c112, %c0_30], %57 {strides = array<i32>} : memref<156x32xf32, #tpu.memory_space<vmem>>, vector<4x32xf32>,
    %59 = vector.extract_strided_slice %0 {offsets = [0, 58], sizes = [4, 32], strides = [1, 1]} : vector<4x108xf32> to vector<4x32xf32>
    %c116 = arith.constant 116 : index
    %c0_31 = arith.constant 0 : index
    %60 = vector.load %arg7[%c116, %c0_31] : memref<156x32xf32, #tpu.memory_space<vmem>>, vector<4x32xf32>
    tpu.vector_store %arg7[%c116, %c0_31], %59 {strides = array<i32>} : memref<156x32xf32, #tpu.memory_space<vmem>>, vector<4x32xf32>,
    %61 = vector.extract_strided_slice %0 {offsets = [0, 60], sizes = [4, 32], strides = [1, 1]} : vector<4x108xf32> to vector<4x32xf32>
    %c120 = arith.constant 120 : index
    %c0_32 = arith.constant 0 : index
    %62 = vector.load %arg7[%c120, %c0_32] : memref<156x32xf32, #tpu.memory_space<vmem>>, vector<4x32xf32>
    tpu.vector_store %arg7[%c120, %c0_32], %61 {strides = array<i32>} : memref<156x32xf32, #tpu.memory_space<vmem>>, vector<4x32xf32>,
    %63 = vector.extract_strided_slice %0 {offsets = [0, 62], sizes = [4, 32], strides = [1, 1]} : vector<4x108xf32> to vector<4x32xf32>
    %c124 = arith.constant 124 : index
    %c0_33 = arith.constant 0 : index
    %64 = vector.load %arg7[%c124, %c0_33] : memref<156x32xf32, #tpu.memory_space<vmem>>, vector<4x32xf32>
    tpu.vector_store %arg7[%c124, %c0_33], %63 {strides = array<i32>} : memref<156x32xf32, #tpu.memory_space<vmem>>, vector<4x32xf32>,
    %65 = vector.extract_strided_slice %0 {offsets = [0, 64], sizes = [4, 32], strides = [1, 1]} : vector<4x108xf32> to vector<4x32xf32>
    %c128 = arith.constant 128 : index
    %c0_34 = arith.constant 0 : index
    %66 = vector.load %arg7[%c128, %c0_34] : memref<156x32xf32, #tpu.memory_space<vmem>>, vector<4x32xf32>
    tpu.vector_store %arg7[%c128, %c0_34], %65 {strides = array<i32>} : memref<156x32xf32, #tpu.memory_space<vmem>>, vector<4x32xf32>,
    %67 = vector.extract_strided_slice %0 {offsets = [0, 66], sizes = [4, 32], strides = [1, 1]} : vector<4x108xf32> to vector<4x32xf32>
    %c132 = arith.constant 132 : index
    %c0_35 = arith.constant 0 : index
    %68 = vector.load %arg7[%c132, %c0_35] : memref<156x32xf32, #tpu.memory_space<vmem>>, vector<4x32xf32>
    tpu.vector_store %arg7[%c132, %c0_35], %67 {strides = array<i32>} : memref<156x32xf32, #tpu.memory_space<vmem>>, vector<4x32xf32>,
    %69 = vector.extract_strided_slice %0 {offsets = [0, 68], sizes = [4, 32], strides = [1, 1]} : vector<4x108xf32> to vector<4x32xf32>
    %c136 = arith.constant 136 : index
    %c0_36 = arith.constant 0 : index
    %70 = vector.load %arg7[%c136, %c0_36] : memref<156x32xf32, #tpu.memory_space<vmem>>, vector<4x32xf32>
    tpu.vector_store %arg7[%c136, %c0_36], %69 {strides = array<i32>} : memref<156x32xf32, #tpu.memory_space<vmem>>, vector<4x32xf32>,
    %71 = vector.extract_strided_slice %0 {offsets = [0, 70], sizes = [4, 32], strides = [1, 1]} : vector<4x108xf32> to vector<4x32xf32>
    %c140 = arith.constant 140 : index
    %c0_37 = arith.constant 0 : index
    %72 = vector.load %arg7[%c140, %c0_37] : memref<156x32xf32, #tpu.memory_space<vmem>>, vector<4x32xf32>
    tpu.vector_store %arg7[%c140, %c0_37], %71 {strides = array<i32>} : memref<156x32xf32, #tpu.memory_space<vmem>>, vector<4x32xf32>,
    %73 = vector.extract_strided_slice %0 {offsets = [0, 72], sizes = [4, 32], strides = [1, 1]} : vector<4x108xf32> to vector<4x32xf32>
    %c144 = arith.constant 144 : index
    %c0_38 = arith.constant 0 : index
    %74 = vector.load %arg7[%c144, %c0_38] : memref<156x32xf32, #tpu.memory_space<vmem>>, vector<4x32xf32>
    tpu.vector_store %arg7[%c144, %c0_38], %73 {strides = array<i32>} : memref<156x32xf32, #tpu.memory_space<vmem>>, vector<4x32xf32>,
    %75 = vector.extract_strided_slice %0 {offsets = [0, 74], sizes = [4, 32], strides = [1, 1]} : vector<4x108xf32> to vector<4x32xf32>
    %c148 = arith.constant 148 : index
    %c0_39 = arith.constant 0 : index
    %76 = vector.load %arg7[%c148, %c0_39] : memref<156x32xf32, #tpu.memory_space<vmem>>, vector<4x32xf32>
    tpu.vector_store %arg7[%c148, %c0_39], %75 {strides = array<i32>} : memref<156x32xf32, #tpu.memory_space<vmem>>, vector<4x32xf32>,
    %77 = vector.extract_strided_slice %0 {offsets = [0, 76], sizes = [4, 32], strides = [1, 1]} : vector<4x108xf32> to vector<4x32xf32>
    %c152 = arith.constant 152 : index
    %c0_40 = arith.constant 0 : index
    %78 = vector.load %arg7[%c152, %c0_40] : memref<156x32xf32, #tpu.memory_space<vmem>>, vector<4x32xf32>
    tpu.vector_store %arg7[%c152, %c0_40], %77 {strides = array<i32>} : memref<156x32xf32, #tpu.memory_space<vmem>>, vector<4x32xf32>,
    %c0_41 = arith.constant 0 : index
    %c0_42 = arith.constant 0 : index
    %79 = vector.load %arg3[%c0_41, %c0_42] : memref<16x156xf32, #tpu.memory_space<vmem>>, vector<16x156xf32>
    %c0_43 = arith.constant 0 : index
    %c0_44 = arith.constant 0 : index
    %80 = vector.load %arg7[%c0_43, %c0_44] : memref<156x32xf32, #tpu.memory_space<vmem>>, vector<156x32xf32>
    %cst = arith.constant dense<0.000000e+00> : vector<16x32xf32>
    %81 = tpu.matmul %79, %80, %cst {dimension_numbers = #tpu.dot_dimension_numbers<[1], [0], [0], [1], [0, 0, 1, 1], [], []>} : vector<16x156xf32>, vector<156x32xf32>, vector<16x32xf32> -> vector<16x32xf32>
    %82 = vector.extract_strided_slice %81 {offsets = [0, 0], sizes = [8, 32], strides = [1, 1]} : vector<16x32xf32> to vector<8x32xf32>
    %83 = vector.extract_strided_slice %81 {offsets = [8, 0], sizes = [8, 32], strides = [1, 1]} : vector<16x32xf32> to vector<8x32xf32>
    %c0_45 = arith.constant 0 : index
    %c0_46 = arith.constant 0 : index
    %84 = vector.load %arg2[%c0_45, %c0_46] : memref<8x32xi32, #tpu.memory_space<vmem>>, vector<8x32xi32>
    %85 = tpu.iota {dimensions = array<i32: 2>} : vector<8x32x32xi32>
    %86 = vector.shape_cast %84 : vector<8x32xi32> to vector<8x32x1xi32>
    %87 = vector.broadcast %86 : vector<8x32x1xi32> to vector<8x32x32xi32>
    %88 = arith.cmpi eq, %87, %85 : vector<8x32x32xi32>
    %89 = arith.extui %88 : vector<8x32x32xi1> to vector<8x32x32xi32>
    %90 = arith.sitofp %89 : vector<8x32x32xi32> to vector<8x32x32xf32>
    %91 = vector.shape_cast %83 : vector<8x32xf32> to vector<8x32x1xf32>
    %92 = vector.broadcast %91 : vector<8x32x1xf32> to vector<8x32x32xf32>
    %93 = arith.mulf %92, %90 : vector<8x32x32xf32>
    %cst_47 = arith.constant dense<0.000000e+00> : vector<8x32xf32>
    %94 = vector.multi_reduction <add>, %93, %cst_47 [1] : vector<8x32x32xf32> to vector<8x32xf32>
    %95 = arith.addf %82, %94 : vector<8x32xf32>
    %cst_48 = arith.constant dense<0.000000e+00> : vector<8xf32>
    %96 = vector.multi_reduction <add>, %95, %cst_48 [1] : vector<8x32xf32> to vector<8xf32>
    %97 = vector.shape_cast %96 : vector<8xf32> to vector<8x1xf32>
    %cst_49 = arith.constant 3.125000e-02 : f32
    %98 = vector.broadcast %cst_49 : f32 to vector<8x1xf32>
    %99 = arith.mulf %97, %98 : vector<8x1xf32>
    %100 = arith.mulf %95, %95 : vector<8x32xf32>
    %cst_50 = arith.constant dense<0.000000e+00> : vector<8xf32>
    %101 = vector.multi_reduction <add>, %100, %cst_50 [1] : vector<8x32xf32> to vector<8xf32>
    %102 = vector.shape_cast %101 : vector<8xf32> to vector<8x1xf32>
    %cst_51 = arith.constant 3.125000e-02 : f32
    %103 = vector.broadcast %cst_51 : f32 to vector<8x1xf32>
    %104 = arith.mulf %102, %103 : vector<8x1xf32>
    %105 = arith.mulf %99, %99 : vector<8x1xf32>
    %106 = arith.subf %104, %105 : vector<8x1xf32>
    %c0_52 = arith.constant 0 : index
    %c0_53 = arith.constant 0 : index
    %107 = vector.load %arg4[%c0_52, %c0_53] : memref<8x1xf32, #tpu.memory_space<vmem>>, vector<8x1xf32>
    %cst_54 = arith.constant 9.99999974E-6 : f32
    %108 = vector.broadcast %cst_54 : f32 to vector<8x1xf32>
    %109 = arith.addf %106, %108 : vector<8x1xf32>
    %110 = math.rsqrt %109 : vector<8x1xf32>
    %111 = arith.mulf %107, %110 : vector<8x1xf32>
    %c0_55 = arith.constant 0 : index
    %c0_56 = arith.constant 0 : index
    %112 = vector.load %arg5[%c0_55, %c0_56] : memref<8x1xf32, #tpu.memory_space<vmem>>, vector<8x1xf32>
    %113 = arith.mulf %99, %111 : vector<8x1xf32>
    %114 = arith.subf %112, %113 : vector<8x1xf32>
    %115 = vector.broadcast %111 : vector<8x1xf32> to vector<8x32xf32>
    %116 = arith.mulf %95, %115 : vector<8x32xf32>
    %117 = vector.broadcast %114 : vector<8x1xf32> to vector<8x32xf32>
    %118 = arith.addf %116, %117 : vector<8x32xf32>
    %cst_57 = arith.constant 0.000000e+00 : f32
    %119 = vector.broadcast %cst_57 : f32 to vector<8x32xf32>
    %120 = arith.maximumf %118, %119 : vector<8x32xf32>
    %c0_58 = arith.constant 0 : index
    %c0_59 = arith.constant 0 : index
    %121 = vector.load %arg6[%c0_58, %c0_59] : memref<8x32xf32, #tpu.memory_space<vmem>>, vector<8x32xf32>
    tpu.vector_store %arg6[%c0_58, %c0_59], %120 {strides = array<i32>} : memref<8x32xf32, #tpu.memory_space<vmem>>, vector<8x32xf32>,
    return
  }
  func.func @transform_0(%arg0: i32) -> (i32, i32) {
    %c0_i32 = arith.constant 0 : i32
    %c0_i32_0 = arith.constant 0 : i32
    %c0_i32_1 = arith.constant 0 : i32
    return %c0_i32, %c0_i32_0 : i32, i32
  }
  func.func @transform_1(%arg0: i32) -> (i32, i32) {
    %c0_i32 = arith.constant 0 : i32
    %c0_i32_0 = arith.constant 0 : i32
    %c0_i32_1 = arith.constant 0 : i32
    return %c0_i32, %c0_i32_0 : i32, i32
  }
  func.func @transform_2(%arg0: i32) -> (i32, i32) {
    %c0_i32 = arith.constant 0 : i32
    %c0_i32_0 = arith.constant 0 : i32
    %c0_i32_1 = arith.constant 0 : i32
    return %c0_i32, %c0_i32_0 : i32, i32
  }
  func.func @transform_3(%arg0: i32) -> (i32, i32) {
    %c0_i32 = arith.constant 0 : i32
    %c0_i32_0 = arith.constant 0 : i32
    %c0_i32_1 = arith.constant 0 : i32
    return %c0_i32, %c0_i32_0 : i32, i32
  }
  func.func @transform_4(%arg0: i32) -> (i32, i32) {
    %c0_i32 = arith.constant 0 : i32
    %c0_i32_0 = arith.constant 0 : i32
    %c0_i32_1 = arith.constant 0 : i32
    return %c0_i32, %c0_i32_0 : i32, i32
  }
  func.func @transform_5(%arg0: i32) -> (i32, i32) {
    %c0_i32 = arith.constant 0 : i32
    %c0_i32_0 = arith.constant 0 : i32
    %c0_i32_1 = arith.constant 0 : i32
    return %c0_i32, %c0_i32_0 : i32, i32
  }
}

</mosaic_0001>

<llo_original>
// kernel: inception_transpose_forward.1
$region0: #{inception_transpose_forward.1}
  #allocation0 [shape = 'u32[]', space=smem, size = 0x4, offset = 0x4, fixed_abs, tag = 'smem constant byte address 0x4 - core index']
  #allocation1 [shape = 'u32[144,128]{1,0:T(1,128)}', space=vmem, size = 0x12000, scoped, tag = 'internal scratch']
  #allocation2 [shape = 'f32[156,32]{1,0:T(8,128)}', space=vmem, size = 0x14000, scoped, tag = 'scratch operand']
  %s0 = inlined_call_operand.vmem [shape: f32[4,108], index: 0, kind: input, shape index: {}]
  %s1 = inlined_call_operand.vmem [shape: s32[8,32], index: 1, kind: input, shape index: {}]
  %s2 = inlined_call_operand.vmem [shape: f32[16,156], index: 2, kind: input, shape index: {}]
  %s3 = inlined_call_operand.vmem [shape: f32[8,1], index: 3, kind: input, shape index: {}]
  %s4 = inlined_call_operand.vmem [shape: f32[8,1], index: 4, kind: input, shape index: {}]
  %s5 = inlined_call_operand.vmem [shape: f32[8,32], index: 5, kind: output, shape index: {}]
  %s6 = sld [smem:[#allocation0]]
  $region30: #{inception_transpose_forward.1} parent=0
    _
  %s8 = ssub.s32 1, %s6
  %s9 = scalar_select 0, %s8, %s6
  // Predicated region
  $region2: #{inception_transpose_forward.1} parent=0 // pred_check
    _
  $region3: #{inception_transpose_forward.1} parent=0 // pred_check_branch
    %11 = sbr.rel (0) target = $region5
  $region4: #{inception_transpose_forward.1} parent=0 // pred_region
    _
  $region5: #{inception_transpose_forward.1} parent=0 // pred_fallthru
    _
  // Predicated region
  $region6: #{inception_transpose_forward.1} parent=0 // pred_check
    _
  $region7: #{inception_transpose_forward.1} parent=0 // pred_check_branch
    %13 = sbr.rel (0) target = $region9
  $region8: #{inception_transpose_forward.1} parent=0 // pred_region
    _
  $region9: #{inception_transpose_forward.1} parent=0 // pred_fallthru
    _
  // Predicated region
  $region10: #{inception_transpose_forward.1} parent=0 // pred_check
    _
  $region11: #{inception_transpose_forward.1} parent=0 // pred_check_branch
    %15 = sbr.rel (0) target = $region13
  $region12: #{inception_transpose_forward.1} parent=0 // pred_region
    _
  $region13: #{inception_transpose_forward.1} parent=0 // pred_fallthru
    _
  // Predicated region
  $region14: #{inception_transpose_forward.1} parent=0 // pred_check
    _
  $region15: #{inception_transpose_forward.1} parent=0 // pred_check_branch
    %17 = sbr.rel (0) target = $region17
  $region16: #{inception_transpose_forward.1} parent=0 // pred_region
    _
  $region17: #{inception_transpose_forward.1} parent=0 // pred_fallthru
    _
  // Predicated region
  $region18: #{inception_transpose_forward.1} parent=0 // pred_check
    _
  $region19: #{inception_transpose_forward.1} parent=0 // pred_check_branch
    %19 = sbr.rel (0) target = $region21
  $region20: #{inception_transpose_forward.1} parent=0 // pred_region
    _
  $region21: #{inception_transpose_forward.1} parent=0 // pred_fallthru
    _
  %v20 = vld [vmem:[%s0] sm:$0xf]
  %vm21 = vcmask 257024
  %22 = vst.msk [vmem:[#allocation2] sm:$0xf] %vm21, %v20
  %24 = vrot.lane.b32.xlu0 %v20, 126
  %v25 = vpop.permute.xlu0 %24
  %27 = vst.msk [vmem:[#allocation2 + $0x4] sm:$0xf] %vm21, %v25
  %28 = vrot.lane.b32.xlu0 %v20, 124
  %v29 = vpop.permute.xlu0 %28
  %31 = vst.msk [vmem:[#allocation2 + $0x8] sm:$0xf] %vm21, %v29
  %32 = vrot.lane.b32.xlu0 %v20, 122
  %v33 = vpop.permute.xlu0 %32
  %35 = vst.msk [vmem:[#allocation2 + $0xc] sm:$0xf] %vm21, %v33
  %36 = vrot.lane.b32.xlu0 %v20, 120
  %v37 = vpop.permute.xlu0 %36
  %39 = vst.msk [vmem:[#allocation2 + $0x10] sm:$0xf] %vm21, %v37
  %40 = vrot.lane.b32.xlu0 %v20, 118
  %v41 = vpop.permute.xlu0 %40
  %43 = vst.msk [vmem:[#allocation2 + $0x14] sm:$0xf] %vm21, %v41
  %44 = vrot.lane.b32.xlu0 %v20, 116
  %v45 = vpop.permute.xlu0 %44
  %47 = vst.msk [vmem:[#allocation2 + $0x18] sm:$0xf] %vm21, %v45
  %48 = vrot.lane.b32.xlu0 %v20, 114
  %v49 = vpop.permute.xlu0 %48
  %51 = vst.msk [vmem:[#allocation2 + $0x1c] sm:$0xf] %vm21, %v49
  %52 = vrot.lane.b32.xlu0 %v20, 112
  %v53 = vpop.permute.xlu0 %52
  %55 = vst.msk [vmem:[#allocation2 + $0x20] sm:$0xf] %vm21, %v53
  %56 = vrot.lane.b32.xlu0 %v20, 110
  %v57 = vpop.permute.xlu0 %56
  %59 = vst.msk [vmem:[#allocation2 + $0x24] sm:$0xf] %vm21, %v57
  %60 = vrot.lane.b32.xlu0 %v20, 108
  %v61 = vpop.permute.xlu0 %60
  %63 = vst.msk [vmem:[#allocation2 + $0x28] sm:$0xf] %vm21, %v61
  %64 = vrot.lane.b32.xlu0 %v20, 106
  %v65 = vpop.permute.xlu0 %64
  %67 = vst.msk [vmem:[#allocation2 + $0x2c] sm:$0xf] %vm21, %v65
  %68 = vrot.lane.b32.xlu0 %v20, 104
  %v69 = vpop.permute.xlu0 %68
  %71 = vst.msk [vmem:[#allocation2 + $0x30] sm:$0xf] %vm21, %v69
  %72 = vrot.lane.b32.xlu0 %v20, 102
  %v73 = vpop.permute.xlu0 %72
  %75 = vst.msk [vmem:[#allocation2 + $0x34] sm:$0xf] %vm21, %v73
  %76 = vrot.lane.b32.xlu0 %v20, 100
  %v77 = vpop.permute.xlu0 %76
  %79 = vst.msk [vmem:[#allocation2 + $0x38] sm:$0xf] %vm21, %v77
  %80 = vrot.lane.b32.xlu0 %v20, 98
  %v81 = vpop.permute.xlu0 %80
  %83 = vst.msk [vmem:[#allocation2 + $0x3c] sm:$0xf] %vm21, %v81
  %84 = vrot.lane.b32.xlu0 %v20, 96
  %v85 = vpop.permute.xlu0 %84
  %87 = vst.msk [vmem:[#allocation2 + $0x40] sm:$0xf] %vm21, %v85
  %88 = vrot.lane.b32.xlu0 %v20, 94
  %v89 = vpop.permute.xlu0 %88
  %91 = vst.msk [vmem:[#allocation2 + $0x44] sm:$0xf] %vm21, %v89
  %92 = vrot.lane.b32.xlu0 %v20, 92
  %v93 = vpop.permute.xlu0 %92
  %95 = vst.msk [vmem:[#allocation2 + $0x48] sm:$0xf] %vm21, %v93
  %96 = vrot.lane.b32.xlu0 %v20, 90
  %v97 = vpop.permute.xlu0 %96
  %99 = vst.msk [vmem:[#allocation2 + $0x4c] sm:$0xf] %vm21, %v97
  %100 = vrot.lane.b32.xlu0 %v20, 88
  %v101 = vpop.permute.xlu0 %100
  %103 = vst.msk [vmem:[#allocation2 + $0x50] sm:$0xf] %vm21, %v101
  %104 = vrot.lane.b32.xlu0 %v20, 86
  %v105 = vpop.permute.xlu0 %104
  %107 = vst.msk [vmem:[#allocation2 + $0x54] sm:$0xf] %vm21, %v105
  %108 = vrot.lane.b32.xlu0 %v20, 84
  %v109 = vpop.permute.xlu0 %108
  %111 = vst.msk [vmem:[#allocation2 + $0x58] sm:$0xf] %vm21, %v109
  %112 = vrot.lane.b32.xlu0 %v20, 82
  %v113 = vpop.permute.xlu0 %112
  %115 = vst.msk [vmem:[#allocation2 + $0x5c] sm:$0xf] %vm21, %v113
  %116 = vrot.lane.b32.xlu0 %v20, 80
  %v117 = vpop.permute.xlu0 %116
  %119 = vst.msk [vmem:[#allocation2 + $0x60] sm:$0xf] %vm21, %v117
  %120 = vrot.lane.b32.xlu0 %v20, 78
  %v121 = vpop.permute.xlu0 %120
  %123 = vst.msk [vmem:[#allocation2 + $0x64] sm:$0xf] %vm21, %v121
  %124 = vrot.lane.b32.xlu0 %v20, 76
  %v125 = vpop.permute.xlu0 %124
  %127 = vst.msk [vmem:[#allocation2 + $0x68] sm:$0xf] %vm21, %v125
  %128 = vrot.lane.b32.xlu0 %v20, 74
  %v129 = vpop.permute.xlu0 %128
  %131 = vst.msk [vmem:[#allocation2 + $0x6c] sm:$0xf] %vm21, %v129
  %132 = vrot.lane.b32.xlu0 %v20, 72
  %v133 = vpop.permute.xlu0 %132
  %135 = vst.msk [vmem:[#allocation2 + $0x70] sm:$0xf] %vm21, %v133
  %136 = vrot.lane.b32.xlu0 %v20, 70
  %v137 = vpop.permute.xlu0 %136
  %139 = vst.msk [vmem:[#allocation2 + $0x74] sm:$0xf] %vm21, %v137
  %140 = vrot.lane.b32.xlu0 %v20, 68
  %v141 = vpop.permute.xlu0 %140
  %143 = vst.msk [vmem:[#allocation2 + $0x78] sm:$0xf] %vm21, %v141
  %144 = vrot.lane.b32.xlu0 %v20, 66
  %v145 = vpop.permute.xlu0 %144
  %147 = vst.msk [vmem:[#allocation2 + $0x7c] sm:$0xf] %vm21, %v145
  %148 = vrot.lane.b32.xlu0 %v20, 64
  %v149 = vpop.permute.xlu0 %148
  %151 = vst.msk [vmem:[#allocation2 + $0x80] sm:$0xf] %vm21, %v149
  %152 = vrot.lane.b32.xlu0 %v20, 62
  %v153 = vpop.permute.xlu0 %152
  %155 = vst.msk [vmem:[#allocation2 + $0x84] sm:$0xf] %vm21, %v153
  %156 = vrot.lane.b32.xlu0 %v20, 60
  %v157 = vpop.permute.xlu0 %156
  %159 = vst.msk [vmem:[#allocation2 + $0x88] sm:$0xf] %vm21, %v157
  %160 = vrot.lane.b32.xlu0 %v20, 58
  %v161 = vpop.permute.xlu0 %160
  %163 = vst.msk [vmem:[#allocation2 + $0x8c] sm:$0xf] %vm21, %v161
  %164 = vrot.lane.b32.xlu0 %v20, 56
  %v165 = vpop.permute.xlu0 %164
  %167 = vst.msk [vmem:[#allocation2 + $0x90] sm:$0xf] %vm21, %v165
  %168 = vrot.lane.b32.xlu0 %v20, 54
  %v169 = vpop.permute.xlu0 %168
  %171 = vst.msk [vmem:[#allocation2 + $0x94] sm:$0xf] %vm21, %v169
  %172 = vrot.lane.b32.xlu0 %v20, 52
  %v173 = vpop.permute.xlu0 %172
  %175 = vst.msk [vmem:[#allocation2 + $0x98] sm:$0xf] %vm21, %v173
  %v176 = vld [vmem:[%s2] sm:$0xff]
  %v177 = vld [vmem:[%s2 + $0x8] sm:$0xff]
  %v178 = vld [vmem:[%s2 + $0x10] sm:$0xff]
  %v179 = vld [vmem:[%s2 + $0x18] sm:$0xff]
  %v180 = vld [vmem:[#allocation2] sm:$0xff]
  %v181 = vld [vmem:[#allocation2 + $0x8] sm:$0xff]
  %v182 = vld [vmem:[#allocation2 + $0x10] sm:$0xff]
  %v183 = vld [vmem:[#allocation2 + $0x18] sm:$0xff]
  %v184 = vld [vmem:[#allocation2 + $0x20] sm:$0xff]
  %v185 = vld [vmem:[#allocation2 + $0x28] sm:$0xff]
  %v186 = vld [vmem:[#allocation2 + $0x30] sm:$0xff]
  %v187 = vld [vmem:[#allocation2 + $0x38] sm:$0xff]
  %v188 = vld [vmem:[#allocation2 + $0x40] sm:$0xff]
  %v189 = vld [vmem:[#allocation2 + $0x48] sm:$0xff]
  %v190 = vld [vmem:[#allocation2 + $0x50] sm:$0xff]
  %v191 = vld [vmem:[#allocation2 + $0x58] sm:$0xff]
  %v192 = vld [vmem:[#allocation2 + $0x60] sm:$0xff]
  %v193 = vld [vmem:[#allocation2 + $0x68] sm:$0xff]
  %v194 = vld [vmem:[#allocation2 + $0x70] sm:$0xff]
  %v195 = vld [vmem:[#allocation2 + $0x78] sm:$0xff]
  %v196 = vld [vmem:[#allocation2 + $0x80] sm:$0xff]
  %v197 = vld [vmem:[#allocation2 + $0x88] sm:$0xff]
  %v198 = vld [vmem:[#allocation2 + $0x90] sm:$0xff]
  %v199 = vld [vmem:[#allocation2 + $0x98] sm:$0xf]
  %vm200 = vcmask 228352
  %v202 = vsel %vm200, %v177, 0
  %v205 = vsel %vm200, %v179, 0
  %vm207 = vcmask 1043456
  %v209 = vsel %vm207, %v199, 0
  %211 = vmatprep.subr.mxu0 0.0
  %212 = vmatpush1.msra.mxu0 %v195
  %213 = vmatprep.subr.mxu0 0.0
  %214 = vmatpush1.msra.mxu0 %v194
  %215 = vmatprep.subr.mxu0 0.0
  %216 = vmatpush1.msra.mxu0 %v193
  %217 = vmatprep.subr.mxu0 0.0
  %218 = vmatpush1.msra.mxu0 %v192
  %219 = vmatprep.subr.mxu0 0.0
  %220 = vmatpush1.msra.mxu0 %v191
  %221 = vmatprep.subr.mxu0 0.0
  %222 = vmatpush1.msra.mxu0 %v190
  %223 = vmatprep.subr.mxu0 0.0
  %224 = vmatpush1.msra.mxu0 %v189
  %225 = vmatprep.subr.mxu0 0.0
  %226 = vmatpush1.msra.mxu0 %v188
  %227 = vmatprep.subr.mxu0 0.0
  %228 = vmatpush1.msra.mxu0 %v187
  %229 = vmatprep.subr.mxu0 0.0
  %230 = vmatpush1.msra.mxu0 %v186
  %231 = vmatprep.subr.mxu0 0.0
  %232 = vmatpush1.msra.mxu0 %v185
  %233 = vmatprep.subr.mxu0 0.0
  %234 = vmatpush1.msra.mxu0 %v184
  %235 = vmatprep.subr.mxu0 0.0
  %236 = vmatpush1.msra.mxu0 %v183
  %237 = vmatprep.subr.mxu0 0.0
  %238 = vmatpush1.msra.mxu0 %v182
  %239 = vmatprep.subr.mxu0 0.0
  %240 = vmatpush1.msra.mxu0 %v181
  %241 = vmatprep.subr.mxu0 0.0
  %242 = vmatpush1.msra.mxu0 %v180
  %243 = vmatprep.subr.mxu0 0.0
  %244 = vmatpush2.msra.mxu0 0.0
  %245 = vmatprep.subr.mxu0 0.0
  %246 = vmatpush2.msra.mxu0 0.0
  %247 = vmatprep.subr.mxu0 0.0
  %248 = vmatpush2.msra.mxu0 0.0
  %249 = vmatprep.subr.mxu0 0.0
  %250 = vmatpush2.msra.mxu0 0.0
  %251 = vmatprep.subr.mxu0 0.0
  %252 = vmatpush2.msra.mxu0 0.0
  %253 = vmatprep.subr.mxu0 0.0
  %254 = vmatpush2.msra.mxu0 0.0
  %255 = vmatprep.subr.mxu0 0.0
  %256 = vmatpush2.msra.mxu0 0.0
  %257 = vmatprep.subr.mxu0 0.0
  %258 = vmatpush2.msra.mxu0 0.0
  %259 = vmatprep.subr.mxu0 0.0
  %260 = vmatpush2.msra.mxu0 0.0
  %261 = vmatprep.subr.mxu0 0.0
  %262 = vmatpush2.msra.mxu0 0.0
  %263 = vmatprep.subr.mxu0 0.0
  %264 = vmatpush2.msra.mxu0 0.0
  %265 = vmatprep.subr.mxu0 0.0
  %266 = vmatpush2.msra.mxu0 0.0
  %267 = vmatprep.subr.mxu0 0.0
  %268 = vmatpush2.msra.mxu0 %v209
  %269 = vmatprep.subr.mxu0 0.0
  %270 = vmatpush2.msra.mxu0 %v198
  %271 = vmatprep.subr.mxu0 0.0
  %272 = vmatpush2.msra.mxu0 %v197
  %273 = vmatprep.subr.mxu0 0.0
  %274 = vmatpush2.msra.mxu0 %v196
  %275 = vmatprep.mubr.f32.mxu0 %v202
  %276 = vmatmul.mubr.f32.gmra.mxu0 %v176
  %v277 = vpop.f32.mrf.mxu0
  %v278 = vadd.f32 0.0, %v277
  %v279 = vpop.f32.mrf.mxu0
  %280 = vmatprep.mubr.f32.mxu0 %v205
  %281 = vmatmul.mubr.f32.gmra.mxu0 %v178
  %v282 = vpop.f32.mrf.mxu0
  %v283 = vadd.f32 0.0, %v282
  %v284 = vpop.f32.mrf.mxu0
  %285 = vdwg.mxu0
  %v286 = vld [vmem:[%s1] sm:$0xff]
  %v287 = vlaneseq
  %v288 = vand.u32 %v287, 127
  %v289 = vlaneseq
  %v290 = vshrl.u32 %v289, 7
  %v291 = vsub.s32 0, %v290
  %v292 = vrot.slane %v286, %v291
  %294 = vbcast.lane.b32.xlu0 %v292, 256
  %v295 = vpop.permute.xlu0 %294
  %s297 = sor.u32 256, 8
  %298 = vbcast.lane.b32.xlu0 %v292, %s297
  %v299 = vpop.permute.xlu0 %298
  %s301 = sor.u32 256, 16
  %302 = vbcast.lane.b32.xlu0 %v292, %s301
  %v303 = vpop.permute.xlu0 %302
  %s305 = sor.u32 256, 24
  %306 = vbcast.lane.b32.xlu0 %v292, %s305
  %v307 = vpop.permute.xlu0 %306
  %v308 = vlaneseq
  %v309 = vshrl.u32 %v308, 7
  %v310 = vsub.s32 1, %v309
  %v311 = vrot.slane %v286, %v310
  %313 = vbcast.lane.b32.xlu0 %v311, 256
  %v314 = vpop.permute.xlu0 %313
  %s316 = sor.u32 256, 8
  %317 = vbcast.lane.b32.xlu0 %v311, %s316
  %v318 = vpop.permute.xlu0 %317
  %s320 = sor.u32 256, 16
  %321 = vbcast.lane.b32.xlu0 %v311, %s320
  %v322 = vpop.permute.xlu0 %321
  %s324 = sor.u32 256, 24
  %325 = vbcast.lane.b32.xlu0 %v311, %s324
  %v326 = vpop.permute.xlu0 %325
  %v327 = vlaneseq
  %v328 = vshrl.u32 %v327, 7
  %v329 = vsub.s32 2, %v328
  %v330 = vrot.slane %v286, %v329
  %332 = vbcast.lane.b32.xlu0 %v330, 256
  %v333 = vpop.permute.xlu0 %332
  %s335 = sor.u32 256, 8
  %336 = vbcast.lane.b32.xlu0 %v330, %s335
  %v337 = vpop.permute.xlu0 %336
  %s339 = sor.u32 256, 16
  %340 = vbcast.lane.b32.xlu0 %v330, %s339
  %v341 = vpop.permute.xlu0 %340
  %s343 = sor.u32 256, 24
  %344 = vbcast.lane.b32.xlu0 %v330, %s343
  %v345 = vpop.permute.xlu0 %344
  %v346 = vlaneseq
  %v347 = vshrl.u32 %v346, 7
  %v348 = vsub.s32 3, %v347
  %v349 = vrot.slane %v286, %v348
  %351 = vbcast.lane.b32.xlu0 %v349, 256
  %v352 = vpop.permute.xlu0 %351
  %s354 = sor.u32 256, 8
  %355 = vbcast.lane.b32.xlu0 %v349, %s354
  %v356 = vpop.permute.xlu0 %355
  %s358 = sor.u32 256, 16
  %359 = vbcast.lane.b32.xlu0 %v349, %s358
  %v360 = vpop.permute.xlu0 %359
  %s362 = sor.u32 256, 24
  %363 = vbcast.lane.b32.xlu0 %v349, %s362
  %v364 = vpop.permute.xlu0 %363
  %v365 = vlaneseq
  %v366 = vshrl.u32 %v365, 7
  %v367 = vsub.s32 4, %v366
  %v368 = vrot.slane %v286, %v367
  %370 = vbcast.lane.b32.xlu0 %v368, 256
  %v371 = vpop.permute.xlu0 %370
  %s373 = sor.u32 256, 8
  %374 = vbcast.lane.b32.xlu0 %v368, %s373
  %v375 = vpop.permute.xlu0 %374
  %s377 = sor.u32 256, 16
  %378 = vbcast.lane.b32.xlu0 %v368, %s377
  %v379 = vpop.permute.xlu0 %378
  %s381 = sor.u32 256, 24
  %382 = vbcast.lane.b32.xlu0 %v368, %s381
  %v383 = vpop.permute.xlu0 %382
  %v384 = vlaneseq
  %v385 = vshrl.u32 %v384, 7
  %v386 = vsub.s32 5, %v385
  %v387 = vrot.slane %v286, %v386
  %389 = vbcast.lane.b32.xlu0 %v387, 256
  %v390 = vpop.permute.xlu0 %389
  %s392 = sor.u32 256, 8
  %393 = vbcast.lane.b32.xlu0 %v387, %s392
  %v394 = vpop.permute.xlu0 %393
  %s396 = sor.u32 256, 16
  %397 = vbcast.lane.b32.xlu0 %v387, %s396
  %v398 = vpop.permute.xlu0 %397
  %s400 = sor.u32 256, 24
  %401 = vbcast.lane.b32.xlu0 %v387, %s400
  %v402 = vpop.permute.xlu0 %401
  %v403 = vlaneseq
  %v404 = vshrl.u32 %v403, 7
  %v405 = vsub.s32 6, %v404
  %v406 = vrot.slane %v286, %v405
  %408 = vbcast.lane.b32.xlu0 %v406, 256
  %v409 = vpop.permute.xlu0 %408
  %s411 = sor.u32 256, 8
  %412 = vbcast.lane.b32.xlu0 %v406, %s411
  %v413 = vpop.permute.xlu0 %412
  %s415 = sor.u32 256, 16
  %416 = vbcast.lane.b32.xlu0 %v406, %s415
  %v417 = vpop.permute.xlu0 %416
  %s419 = sor.u32 256, 24
  %420 = vbcast.lane.b32.xlu0 %v406, %s419
  %v421 = vpop.permute.xlu0 %420
  %v422 = vlaneseq
  %v423 = vshrl.u32 %v422, 7
  %v424 = vsub.s32 7, %v423
  %v425 = vrot.slane %v286, %v424
  %427 = vbcast.lane.b32.xlu0 %v425, 256
  %v428 = vpop.permute.xlu0 %427
  %s430 = sor.u32 256, 8
  %431 = vbcast.lane.b32.xlu0 %v425, %s430
  %v432 = vpop.permute.xlu0 %431
  %s434 = sor.u32 256, 16
  %435 = vbcast.lane.b32.xlu0 %v425, %s434
  %v436 = vpop.permute.xlu0 %435
  %s438 = sor.u32 256, 24
  %439 = vbcast.lane.b32.xlu0 %v425, %s438
  %v440 = vpop.permute.xlu0 %439
  %vm441 = vcmp.eq.s32.totalorder %v295, %v288
  %vm442 = vcmp.eq.s32.totalorder %v299, %v288
  %vm443 = vcmp.eq.s32.totalorder %v303, %v288
  %vm444 = vcmp.eq.s32.totalorder %v307, %v288
  %vm445 = vcmp.eq.s32.totalorder %v314, %v288
  %vm446 = vcmp.eq.s32.totalorder %v318, %v288
  %vm447 = vcmp.eq.s32.totalorder %v322, %v288
  %vm448 = vcmp.eq.s32.totalorder %v326, %v288
  %vm449 = vcmp.eq.s32.totalorder %v333, %v288
  %vm450 = vcmp.eq.s32.totalorder %v337, %v288
  %vm451 = vcmp.eq.s32.totalorder %v341, %v288
  %vm452 = vcmp.eq.s32.totalorder %v345, %v288
  %vm453 = vcmp.eq.s32.totalorder %v352, %v288
  %vm454 = vcmp.eq.s32.totalorder %v356, %v288
  %vm455 = vcmp.eq.s32.totalorder %v360, %v288
  %vm456 = vcmp.eq.s32.totalorder %v364, %v288
  %vm457 = vcmp.eq.s32.totalorder %v371, %v288
  %vm458 = vcmp.eq.s32.totalorder %v375, %v288
  %vm459 = vcmp.eq.s32.totalorder %v379, %v288
  %vm460 = vcmp.eq.s32.totalorder %v383, %v288
  %vm461 = vcmp.eq.s32.totalorder %v390, %v288
  %vm462 = vcmp.eq.s32.totalorder %v394, %v288
  %vm463 = vcmp.eq.s32.totalorder %v398, %v288
  %vm464 = vcmp.eq.s32.totalorder %v402, %v288
  %vm465 = vcmp.eq.s32.totalorder %v409, %v288
  %vm466 = vcmp.eq.s32.totalorder %v413, %v288
  %vm467 = vcmp.eq.s32.totalorder %v417, %v288
  %vm468 = vcmp.eq.s32.totalorder %v421, %v288
  %vm469 = vcmp.eq.s32.totalorder %v428, %v288
  %vm470 = vcmp.eq.s32.totalorder %v432, %v288
  %vm471 = vcmp.eq.s32.totalorder %v436, %v288
  %vm472 = vcmp.eq.s32.totalorder %v440, %v288
  %v473 = vsel %vm441, 1, 0
  %v474 = vsel %vm442, 1, 0
  %v475 = vsel %vm443, 1, 0
  %v476 = vsel %vm444, 1, 0
  %v477 = vsel %vm445, 1, 0
  %v478 = vsel %vm446, 1, 0
  %v479 = vsel %vm447, 1, 0
  %v480 = vsel %vm448, 1, 0
  %v481 = vsel %vm449, 1, 0
  %v482 = vsel %vm450, 1, 0
  %v483 = vsel %vm451, 1, 0
  %v484 = vsel %vm452, 1, 0
  %v485 = vsel %vm453, 1, 0
  %v486 = vsel %vm454, 1, 0
  %v487 = vsel %vm455, 1, 0
  %v488 = vsel %vm456, 1, 0
  %v489 = vsel %vm457, 1, 0
  %v490 = vsel %vm458, 1, 0
  %v491 = vsel %vm459, 1, 0
  %v492 = vsel %vm460, 1, 0
  %v493 = vsel %vm461, 1, 0
  %v494 = vsel %vm462, 1, 0
  %v495 = vsel %vm463, 1, 0
  %v496 = vsel %vm464, 1, 0
  %v497 = vsel %vm465, 1, 0
  %v498 = vsel %vm466, 1, 0
  %v499 = vsel %vm467, 1, 0
  %v500 = vsel %vm468, 1, 0
  %v501 = vsel %vm469, 1, 0
  %v502 = vsel %vm470, 1, 0
  %v503 = vsel %vm471, 1, 0
  %v504 = vsel %vm472, 1, 0
  %v505 = vcvt.s32.f32 %v473
  %v506 = vcvt.s32.f32 %v474
  %v507 = vcvt.s32.f32 %v475
  %v508 = vcvt.s32.f32 %v476
  %v509 = vcvt.s32.f32 %v477
  %v510 = vcvt.s32.f32 %v478
  %v511 = vcvt.s32.f32 %v479
  %v512 = vcvt.s32.f32 %v480
  %v513 = vcvt.s32.f32 %v481
  %v514 = vcvt.s32.f32 %v482
  %v515 = vcvt.s32.f32 %v483
  %v516 = vcvt.s32.f32 %v484
  %v517 = vcvt.s32.f32 %v485
  %v518 = vcvt.s32.f32 %v486
  %v519 = vcvt.s32.f32 %v487
  %v520 = vcvt.s32.f32 %v488
  %v521 = vcvt.s32.f32 %v489
  %v522 = vcvt.s32.f32 %v490
  %v523 = vcvt.s32.f32 %v491
  %v524 = vcvt.s32.f32 %v492
  %v525 = vcvt.s32.f32 %v493
  %v526 = vcvt.s32.f32 %v494
  %v527 = vcvt.s32.f32 %v495
  %v528 = vcvt.s32.f32 %v496
  %v529 = vcvt.s32.f32 %v497
  %v530 = vcvt.s32.f32 %v498
  %v531 = vcvt.s32.f32 %v499
  %v532 = vcvt.s32.f32 %v500
  %v533 = vcvt.s32.f32 %v501
  %v534 = vcvt.s32.f32 %v502
  %v535 = vcvt.s32.f32 %v503
  %v536 = vcvt.s32.f32 %v504
  %v537 = vlaneseq
  %v538 = vshrl.u32 %v537, 7
  %v539 = vsub.s32 0, %v538
  %v540 = vrot.slane %v283, %v539
  %542 = vbcast.lane.b32.xlu0 %v540, 256
  %v543 = vpop.permute.xlu0 %542
  %s545 = sor.u32 256, 8
  %546 = vbcast.lane.b32.xlu0 %v540, %s545
  %v547 = vpop.permute.xlu0 %546
  %s549 = sor.u32 256, 16
  %550 = vbcast.lane.b32.xlu0 %v540, %s549
  %v551 = vpop.permute.xlu0 %550
  %s553 = sor.u32 256, 24
  %554 = vbcast.lane.b32.xlu0 %v540, %s553
  %v555 = vpop.permute.xlu0 %554
  %v556 = vlaneseq
  %v557 = vshrl.u32 %v556, 7
  %v558 = vsub.s32 1, %v557
  %v559 = vrot.slane %v283, %v558
  %561 = vbcast.lane.b32.xlu0 %v559, 256
  %v562 = vpop.permute.xlu0 %561
  %s564 = sor.u32 256, 8
  %565 = vbcast.lane.b32.xlu0 %v559, %s564
  %v566 = vpop.permute.xlu0 %565
  %s568 = sor.u32 256, 16
  %569 = vbcast.lane.b32.xlu0 %v559, %s568
  %v570 = vpop.permute.xlu0 %569
  %s572 = sor.u32 256, 24
  %573 = vbcast.lane.b32.xlu0 %v559, %s572
  %v574 = vpop.permute.xlu0 %573
  %v575 = vlaneseq
  %v576 = vshrl.u32 %v575, 7
  %v577 = vsub.s32 2, %v576
  %v578 = vrot.slane %v283, %v577
  %580 = vbcast.lane.b32.xlu0 %v578, 256
  %v581 = vpop.permute.xlu0 %580
  %s583 = sor.u32 256, 8
  %584 = vbcast.lane.b32.xlu0 %v578, %s583
  %v585 = vpop.permute.xlu0 %584
  %s587 = sor.u32 256, 16
  %588 = vbcast.lane.b32.xlu0 %v578, %s587
  %v589 = vpop.permute.xlu0 %588
  %s591 = sor.u32 256, 24
  %592 = vbcast.lane.b32.xlu0 %v578, %s591
  %v593 = vpop.permute.xlu0 %592
  %v594 = vlaneseq
  %v595 = vshrl.u32 %v594, 7
  %v596 = vsub.s32 3, %v595
  %v597 = vrot.slane %v283, %v596
  %599 = vbcast.lane.b32.xlu0 %v597, 256
  %v600 = vpop.permute.xlu0 %599
  %s602 = sor.u32 256, 8
  %603 = vbcast.lane.b32.xlu0 %v597, %s602
  %v604 = vpop.permute.xlu0 %603
  %s606 = sor.u32 256, 16
  %607 = vbcast.lane.b32.xlu0 %v597, %s606
  %v608 = vpop.permute.xlu0 %607
  %s610 = sor.u32 256, 24
  %611 = vbcast.lane.b32.xlu0 %v597, %s610
  %v612 = vpop.permute.xlu0 %611
  %v613 = vlaneseq
  %v614 = vshrl.u32 %v613, 7
  %v615 = vsub.s32 4, %v614
  %v616 = vrot.slane %v283, %v615
  %618 = vbcast.lane.b32.xlu0 %v616, 256
  %v619 = vpop.permute.xlu0 %618
  %s621 = sor.u32 256, 8
  %622 = vbcast.lane.b32.xlu0 %v616, %s621
  %v623 = vpop.permute.xlu0 %622
  %s625 = sor.u32 256, 16
  %626 = vbcast.lane.b32.xlu0 %v616, %s625
  %v627 = vpop.permute.xlu0 %626
  %s629 = sor.u32 256, 24
  %630 = vbcast.lane.b32.xlu0 %v616, %s629
  %v631 = vpop.permute.xlu0 %630
  %v632 = vlaneseq
  %v633 = vshrl.u32 %v632, 7
  %v634 = vsub.s32 5, %v633
  %v635 = vrot.slane %v283, %v634
  %637 = vbcast.lane.b32.xlu0 %v635, 256
  %v638 = vpop.permute.xlu0 %637
  %s640 = sor.u32 256, 8
  %641 = vbcast.lane.b32.xlu0 %v635, %s640
  %v642 = vpop.permute.xlu0 %641
  %s644 = sor.u32 256, 16
  %645 = vbcast.lane.b32.xlu0 %v635, %s644
  %v646 = vpop.permute.xlu0 %645
  %s648 = sor.u32 256, 24
  %649 = vbcast.lane.b32.xlu0 %v635, %s648
  %v650 = vpop.permute.xlu0 %649
  %v651 = vlaneseq
  %v652 = vshrl.u32 %v651, 7
  %v653 = vsub.s32 6, %v652
  %v654 = vrot.slane %v283, %v653
  %656 = vbcast.lane.b32.xlu0 %v654, 256
  %v657 = vpop.permute.xlu0 %656
  %s659 = sor.u32 256, 8
  %660 = vbcast.lane.b32.xlu0 %v654, %s659
  %v661 = vpop.permute.xlu0 %660
  %s663 = sor.u32 256, 16
  %664 = vbcast.lane.b32.xlu0 %v654, %s663
  %v665 = vpop.permute.xlu0 %664
  %s667 = sor.u32 256, 24
  %668 = vbcast.lane.b32.xlu0 %v654, %s667
  %v669 = vpop.permute.xlu0 %668
  %v670 = vlaneseq
  %v671 = vshrl.u32 %v670, 7
  %v672 = vsub.s32 7, %v671
  %v673 = vrot.slane %v283, %v672
  %675 = vbcast.lane.b32.xlu0 %v673, 256
  %v676 = vpop.permute.xlu0 %675
  %s678 = sor.u32 256, 8
  %679 = vbcast.lane.b32.xlu0 %v673, %s678
  %v680 = vpop.permute.xlu0 %679
  %s682 = sor.u32 256, 16
  %683 = vbcast.lane.b32.xlu0 %v673, %s682
  %v684 = vpop.permute.xlu0 %683
  %s686 = sor.u32 256, 24
  %687 = vbcast.lane.b32.xlu0 %v673, %s686
  %v688 = vpop.permute.xlu0 %687
  %v689 = vmul.f32 %v543, %v505
  %v690 = vmul.f32 %v547, %v506
  %v691 = vmul.f32 %v551, %v507
  %v692 = vmul.f32 %v555, %v508
  %v693 = vmul.f32 %v562, %v509
  %v694 = vmul.f32 %v566, %v510
  %v695 = vmul.f32 %v570, %v511
  %v696 = vmul.f32 %v574, %v512
  %v697 = vmul.f32 %v581, %v513
  %v698 = vmul.f32 %v585, %v514
  %v699 = vmul.f32 %v589, %v515
  %v700 = vmul.f32 %v593, %v516
  %v701 = vmul.f32 %v600, %v517
  %v702 = vmul.f32 %v604, %v518
  %v703 = vmul.f32 %v608, %v519
  %v704 = vmul.f32 %v612, %v520
  %v705 = vmul.f32 %v619, %v521
  %v706 = vmul.f32 %v623, %v522
  %v707 = vmul.f32 %v627, %v523
  %v708 = vmul.f32 %v631, %v524
  %v709 = vmul.f32 %v638, %v525
  %v710 = vmul.f32 %v642, %v526
  %v711 = vmul.f32 %v646, %v527
  %v712 = vmul.f32 %v650, %v528
  %v713 = vmul.f32 %v657, %v529
  %v714 = vmul.f32 %v661, %v530
  %v715 = vmul.f32 %v665, %v531
  %v716 = vmul.f32 %v669, %v532
  %v717 = vmul.f32 %v676, %v533
  %v718 = vmul.f32 %v680, %v534
  %v719 = vmul.f32 %v684, %v535
  %v720 = vmul.f32 %v688, %v536
  %vm721 = vcmask 261120
  %v722 = vsel %vm721, %v689, 0.0
  %v723 = vsel %vm721, %v690, 0.0
  %v724 = vadd.f32 %v722, %v723
  %v725 = vsel %vm721, %v691, 0.0
  %v726 = vadd.f32 %v724, %v725
  %v727 = vsel %vm721, %v692, 0.0
  %v728 = vadd.f32 %v726, %v727
  %v729 = vrot.slane %v728, 4
  %v730 = vadd.f32 %v728, %v729
  %v731 = vrot.slane %v730, 2
  %v732 = vadd.f32 %v730, %v731
  %v733 = vrot.slane %v732, 1
  %v734 = vadd.f32 %v732, %v733
  %v735 = vsel %vm721, %v693, 0.0
  %v736 = vsel %vm721, %v694, 0.0
  %v737 = vadd.f32 %v735, %v736
  %v738 = vsel %vm721, %v695, 0.0
  %v739 = vadd.f32 %v737, %v738
  %v740 = vsel %vm721, %v696, 0.0
  %v741 = vadd.f32 %v739, %v740
  %v742 = vrot.slane %v741, 4
  %v743 = vadd.f32 %v741, %v742
  %v744 = vrot.slane %v743, 2
  %v745 = vadd.f32 %v743, %v744
  %v746 = vrot.slane %v745, 1
  %v747 = vadd.f32 %v745, %v746
  %v748 = vsel %vm721, %v697, 0.0
  %v749 = vsel %vm721, %v698, 0.0
  %v750 = vadd.f32 %v748, %v749
  %v751 = vsel %vm721, %v699, 0.0
  %v752 = vadd.f32 %v750, %v751
  %v753 = vsel %vm721, %v700, 0.0
  %v754 = vadd.f32 %v752, %v753
  %v755 = vrot.slane %v754, 4
  %v756 = vadd.f32 %v754, %v755
  %v757 = vrot.slane %v756, 2
  %v758 = vadd.f32 %v756, %v757
  %v759 = vrot.slane %v758, 1
  %v760 = vadd.f32 %v758, %v759
  %v761 = vsel %vm721, %v701, 0.0
  %v762 = vsel %vm721, %v702, 0.0
  %v763 = vadd.f32 %v761, %v762
  %v764 = vsel %vm721, %v703, 0.0
  %v765 = vadd.f32 %v763, %v764
  %v766 = vsel %vm721, %v704, 0.0
  %v767 = vadd.f32 %v765, %v766
  %v768 = vrot.slane %v767, 4
  %v769 = vadd.f32 %v767, %v768
  %v770 = vrot.slane %v769, 2
  %v771 = vadd.f32 %v769, %v770
  %v772 = vrot.slane %v771, 1
  %v773 = vadd.f32 %v771, %v772
  %v774 = vsel %vm721, %v705, 0.0
  %v775 = vsel %vm721, %v706, 0.0
  %v776 = vadd.f32 %v774, %v775
  %v777 = vsel %vm721, %v707, 0.0
  %v778 = vadd.f32 %v776, %v777
  %v779 = vsel %vm721, %v708, 0.0
  %v780 = vadd.f32 %v778, %v779
  %v781 = vrot.slane %v780, 4
  %v782 = vadd.f32 %v780, %v781
  %v783 = vrot.slane %v782, 2
  %v784 = vadd.f32 %v782, %v783
  %v785 = vrot.slane %v784, 1
  %v786 = vadd.f32 %v784, %v785
  %v787 = vsel %vm721, %v709, 0.0
  %v788 = vsel %vm721, %v710, 0.0
  %v789 = vadd.f32 %v787, %v788
  %v790 = vsel %vm721, %v711, 0.0
  %v791 = vadd.f32 %v789, %v790
  %v792 = vsel %vm721, %v712, 0.0
  %v793 = vadd.f32 %v791, %v792
  %v794 = vrot.slane %v793, 4
  %v795 = vadd.f32 %v793, %v794
  %v796 = vrot.slane %v795, 2
  %v797 = vadd.f32 %v795, %v796
  %v798 = vrot.slane %v797, 1
  %v799 = vadd.f32 %v797, %v798
  %v800 = vsel %vm721, %v713, 0.0
  %v801 = vsel %vm721, %v714, 0.0
  %v802 = vadd.f32 %v800, %v801
  %v803 = vsel %vm721, %v715, 0.0
  %v804 = vadd.f32 %v802, %v803
  %v805 = vsel %vm721, %v716, 0.0
  %v806 = vadd.f32 %v804, %v805
  %v807 = vrot.slane %v806, 4
  %v808 = vadd.f32 %v806, %v807
  %v809 = vrot.slane %v808, 2
  %v810 = vadd.f32 %v808, %v809
  %v811 = vrot.slane %v810, 1
  %v812 = vadd.f32 %v810, %v811
  %v813 = vsel %vm721, %v717, 0.0
  %v814 = vsel %vm721, %v718, 0.0
  %v815 = vadd.f32 %v813, %v814
  %v816 = vsel %vm721, %v719, 0.0
  %v817 = vadd.f32 %v815, %v816
  %v818 = vsel %vm721, %v720, 0.0
  %v819 = vadd.f32 %v817, %v818
  %v820 = vrot.slane %v819, 4
  %v821 = vadd.f32 %v819, %v820
  %v822 = vrot.slane %v821, 2
  %v823 = vadd.f32 %v821, %v822
  %v824 = vrot.slane %v823, 1
  %v825 = vadd.f32 %v823, %v824
  %vm834 = vcmask 1041409
  %v835 = vsel %vm834, %v747, %v734
  %vm836 = vcmask 1042434
  %v837 = vsel %vm836, %v760, %v835
  %vm838 = vcmask 1043459
  %v839 = vsel %vm838, %v773, %v837
  %vm840 = vcmask 1044484
  %v841 = vsel %vm840, %v786, %v839
  %vm842 = vcmask 1045509
  %v843 = vsel %vm842, %v799, %v841
  %vm844 = vcmask 1046534
  %v845 = vsel %vm844, %v812, %v843
  %vm846 = vcmask 1047559
  %v847 = vsel %vm846, %v825, %v845
  %v849 = vadd.f32 %v278, %v847
  %v850 = vsel %vm721, %v849, 0.0
  %851 = vadd.xlane.f32.xlu0 %v850
  %v852 = vpop.xlane.xlu0 %851
  %v853 = vmul.f32 %v852, 0.03125
  %v854 = vmul.f32 %v849, %v849
  %v855 = vsel %vm721, %v854, 0.0
  %856 = vadd.xlane.f32.xlu0 %v855
  %v857 = vpop.xlane.xlu0 %856
  %v858 = vmul.f32 %v857, 0.03125
  %v859 = vmul.f32 %v853, %v853
  %v860 = vsub.f32 %v858, %v859
  %v861 = vld [vmem:[%s3] sm:$0xff]
  %v862 = vadd.f32 %v860, 1e-05
  %v863 = vrsqrt.pop %v862
  %v864 = vmul.f32 %v861, %v863
  %v865 = vld [vmem:[%s4] sm:$0xff]
  %v866 = vmul.f32 %v853, %v864
  %v867 = vsub.f32 %v865, %v866
  %869 = vset.pattern.permute.xlu0 0
  %870 = vperm.xlu0 %869, %v864
  %v871 = vpop.permute.xlu0 %870
  %v873 = vmul.f32 %v849, %v871
  %875 = vset.pattern.permute.xlu0 0
  %876 = vperm.xlu0 %875, %v867
  %v877 = vpop.permute.xlu0 %876
  %v879 = vadd.f32 %v873, %v877
  %v880 = vmax.f32 %v879, 0.0
  %881 = vst.msk [vmem:[%s5] sm:$0xff] %vm721, %v880
  // Predicated region
  $region22: #{inception_transpose_forward.1} parent=0 // pred_check
    _
  $region23: #{inception_transpose_forward.1} parent=0 // pred_check_branch
    %883 = sbr.rel (0) target = $region25
  $region24: #{inception_transpose_forward.1} parent=0 // pred_region
    _
  $region25: #{inception_transpose_forward.1} parent=0 // pred_fallthru
    _
  // Predicated region
  $region26: #{inception_transpose_forward.1} parent=0 // pred_check
    _
  $region27: #{inception_transpose_forward.1} parent=0 // pred_check_branch
    %885 = sbr.rel (0) target = $region29
  $region28: #{inception_transpose_forward.1} parent=0 // pred_region
    _
  $region29: #{inception_transpose_forward.1} parent=0 // pred_fallthru
    _

</llo_original>
